<compile_context>
chip_gen: v7x
topology: tpu7x:2x2x1
jax: 0.10.0
libtpu: 0.0.40
codegen_flags: <defaults>
</compile_context>

<pallas_src>
import jax
import jax.numpy as jnp
from jax.experimental import pallas as pl
from jax.experimental.pallas import tpu as pltpu


def _persist_kernel(x_ref, o_ref):
    # x_ref: (1, 1, TH, W)            = X[b, S-1, h_tile]
    # o_ref: (1, out_seq_len, TH, W)  = output[b, :, h_tile]
    o_ref[...] = jnp.broadcast_to(x_ref[...], o_ref.shape)


def _choose_th(H, W, out_seq_len, dtype_bytes, budget_bytes=4 * 1024 * 1024):
    """Largest H-tile that (a) is legal (multiple of 8 or the full dim) and
    (b) keeps the per-step output block under `budget_bytes`."""
    if H % 8 != 0:
        # Non-tileable H: use the full dim (always a legal block shape).
        return H
    best = 8
    for th in range(8, H + 1, 8):
        if H % th == 0 and out_seq_len * th * W * dtype_bytes <= budget_bytes:
            best = th
    return best


def persistant_model(x: jax.Array, out_seq_len: int = 12) -> jax.Array:
    """Repeat the last time step of x (B, S, H, W) -> (B, out_seq_len, H, W)."""
    B, S, H, W = x.shape

    # Pre-slice the last timestep: input to the kernel is (B, 1, H, W), so the
    # input index_map is constant and the pipeliner never re-fetches it.
    x_last = jax.lax.slice_in_dim(x, S - 1, S, axis=1)

    dtype_bytes = jnp.dtype(x.dtype).itemsize
    TH = _choose_th(H, W, out_seq_len, dtype_bytes)
    grid = (B, H // TH)

    return pl.pallas_call(
        _persist_kernel,
        out_shape=jax.ShapeDtypeStruct((B, out_seq_len, H, W), x.dtype),
        grid_spec=pltpu.PrefetchScalarGridSpec(
            num_scalar_prefetch=0,
            grid=grid,
            in_specs=[
                pl.BlockSpec((1, 1, TH, W), lambda b, h: (b, 0, h, 0)),
            ],
            out_specs=pl.BlockSpec(
                (1, out_seq_len, TH, W), lambda b, h: (b, 0, h, 0)
            ),
        ),
        compiler_params=pltpu.CompilerParams(
            # Both axes are independent work -> shard across TensorCores (v7x).
            dimension_semantics=("parallel", "parallel"),
        ),
    )(x_last)


def persistant_model_ref(x: jax.Array, out_seq_len: int = 12) -> jax.Array:
    """Pure-JAX reference matching torch.stack([X[:, -1]]*L, dim=1)."""
    last = x[:, -1]  # (B, H, W)
    return jnp.broadcast_to(
        last[:, None], (x.shape[0], out_seq_len) + last.shape[1:]
    )


if __name__ == "__main__":
    key = jax.random.PRNGKey(0)
    # small, TPU-tile-friendly shapes: B=2, S=8, H=8, W=128
    B, S, H, W = 2, 8, 8, 128
    out_seq_len = 12

    x = jax.random.normal(key, (B, S, H, W), dtype=jnp.float32)

    out = persistant_model(x, out_seq_len=out_seq_len)
    out = jax.block_until_ready(out)

    ref = persistant_model_ref(x, out_seq_len=out_seq_len)

    assert out.shape == (B, out_seq_len, H, W), out.shape
    assert out.dtype == x.dtype
    assert jnp.array_equal(out, ref), "mismatch vs reference"

    print("KERNEL_OK")
</pallas_src>

<mosaic_0001>
module attributes {stable_mosaic.version = 11 : i64} {
  func.func @_persist_kernel(%arg0: i32, %arg1: i32, %arg2: memref<1x1x8x128xf32, #tpu.memory_space<vmem>>, %arg3: memref<1x12x8x128xf32, #tpu.memory_space<vmem>>) attributes {dimension_semantics = [#tpu.dimension_semantics<parallel>, #tpu.dimension_semantics<parallel>], iteration_bounds = array<i64: 2, 1>, scalar_prefetch = 0 : i64, scratch_operands = 0 : i64, tpu.core_type = #tpu.core_type<tc>, window_params = [{transform_indices = @transform_0, window_bounds = array<i64: 1, 1, 8, 128>}, {transform_indices = @transform_1, window_bounds = array<i64: 1, 12, 8, 128>}]} {
    %c0 = arith.constant 0 : index
    %c0_0 = arith.constant 0 : index
    %c0_1 = arith.constant 0 : index
    %c0_2 = arith.constant 0 : index
    %0 = vector.load %arg2[%c0, %c0_0, %c0_1, %c0_2] : memref<1x1x8x128xf32, #tpu.memory_space<vmem>>, vector<1x1x8x128xf32>
    %1 = vector.shape_cast %0 : vector<1x1x8x128xf32> to vector<1x1x8x128xf32>
    %2 = vector.broadcast %1 : vector<1x1x8x128xf32> to vector<1x12x8x128xf32>
    %c0_3 = arith.constant 0 : index
    %c0_4 = arith.constant 0 : index
    %c0_5 = arith.constant 0 : index
    %c0_6 = arith.constant 0 : index
    %3 = vector.load %arg3[%c0_3, %c0_4, %c0_5, %c0_6] : memref<1x12x8x128xf32, #tpu.memory_space<vmem>>, vector<1x12x8x128xf32>
    tpu.vector_store %arg3[%c0_3, %c0_4, %c0_5, %c0_6], %2 {strides = array<i32>} : memref<1x12x8x128xf32, #tpu.memory_space<vmem>>, vector<1x12x8x128xf32>,
    return
  }
  func.func @transform_0(%arg0: i32, %arg1: i32) -> (i32, i32, i32, i32) {
    %c0_i32 = arith.constant 0 : i32
    %c0_i32_0 = arith.constant 0 : i32
    %c0_i32_1 = arith.constant 0 : i32
    return %arg0, %c0_i32, %arg1, %c0_i32_0 : i32, i32, i32, i32
  }
  func.func @transform_1(%arg0: i32, %arg1: i32) -> (i32, i32, i32, i32) {
    %c0_i32 = arith.constant 0 : i32
    %c0_i32_0 = arith.constant 0 : i32
    %c0_i32_1 = arith.constant 0 : i32
    return %arg0, %c0_i32, %arg1, %c0_i32_0 : i32, i32, i32, i32
  }
}

</mosaic_0001>

<llo_original>
// kernel: tpu_custom_call.1
$region0: #{tpu_custom_call.1}
  #allocation0 [shape = 'u32[]', space=smem, size = 0x4, offset = 0x4, fixed_abs, tag = 'smem constant byte address 0x4 - core index']
  #allocation1 [shape = 'u32[144,128]{1,0:T(1,128)}', space=vmem, size = 0x12000, scoped, tag = 'internal scratch']
  %s0 = inlined_call_operand.hbm [shape: f32[2,1,8,128], index: 0, kind: input, shape index: {}]
  %s1 = inlined_call_operand.hbm [shape: f32[2,12,8,128], index: 1, kind: output, shape index: {}]
  %s2 = sld [smem:[#allocation0]]
  $region41: #{tpu_custom_call.1} parent=0
    _
  %s4 = ssub.s32 1, %s2
  %s5 = scalar_select 0, %s4, %s2
  $region1: #{tpu_custom_call.1} parent=0
    #allocation2 [shape = 'u8[8192]{0}', space=vmem, size = 0x2000, scoped, tag = 'input window, operand 0']
    #allocation3 [shape = 's32[2]{0}', space=sflag, size = 0x8, scoped, tag = 'scoped memory for tpu_custom_call.1']
    #allocation4 [shape = 's32[2]{0}', space=sflag, size = 0x8, scoped, tag = 'scoped memory for tpu_custom_call.1']
    #allocation5 [shape = 'u8[98304]{0}', space=vmem, size = 0x18000, scoped, tag = 'output window, operand 0']
    %6 = vsyncpa [#allocation3], 0
    %s7 = scalar_lea.sflag [#allocation3], 1
    %8 = vsyncpa %s7, 0
    %9 = vsyncpa [#allocation4], 0
    %s10 = scalar_lea.sflag [#allocation4], 1
    %11 = vsyncpa %s10, 0
    loop: start=0, step=1, limit=4
    $region2: #{tpu_custom_call.1} parent=1 // loop_pre_header
      _
    $region3: #{tpu_custom_call.1} parent=1 // loop_header
      %s13 = sphi 0, %s17
      %p14 = scmp.ge.s32.totalorder %s13, 4
      %s20 = sphi 0, %s32
      %s21 = sphi 0, %s28
      %s22 = sphi 0, %s20
      %s23 = sphi 0, %s21
      %s24 = sphi 0, %s22
      %s25 = sphi 0, %s23
      %s37 = sphi 0, %s39
      %s40 = sphi 0, %s37
      %s41 = sphi 0, %s40
      %s57 = sphi 0, %s41
      %s65 = sphi 0, %s67
      %s68 = sphi 0, %s65
      %s69 = sphi 0, %s68
      %s85 = sphi 0, %s69
    $region4: #{tpu_custom_call.1} parent=1 // loop_header_branch
      %16 = sbr.rel (%p14) target = $region8
    $region5: #{tpu_custom_call.1} parent=1 // loop_body
      %s18 = ssub.s32 %s13, 1
      %s19 = ssub.s32 %s13, 2
      %s26 = sadd.s32 1, %s21
      %p27 = scmp.ge.s32.totalorder %s26, 1
      %s28 = scalar_select %p27, 0, %s26
      %s29 = sadd.s32 1, %s20
      %s30 = scalar_select %p27, %s29, %s20
      %p31 = scmp.ge.s32.totalorder %s30, 2
      %s32 = scalar_select %p31, 0, %s30
      %s33 = ssub.s32 %s20, %s32
      %s34 = ssub.s32 %s21, %s28
      %s35 = sor.u32 %s33, %s34
      %p36 = scmp.eq.s32.totalorder %s35, 0
      %s38 = sadd.s32 %s37, 1
      %s39 = scalar_select %p36, %s37, %s38
      %p42 = pneg %p36
      %p43 = scmp.eq.s32.totalorder %s13, 1
      %p44 = por %p42, %p43
      %p45 = scmp.ne.s32.totalorder %s37, %s40
      %p46 = scmp.eq.s32.totalorder %s13, 0
      %p47 = por %p45, %p46
      %p48 = scmp.ne.s32.totalorder %s37, %s40
      %p49 = scmp.eq.s32.totalorder %s18, 1
      %p50 = por %p48, %p49
      %p51 = scmp.ne.s32.totalorder %s40, %s41
      %p52 = scmp.eq.s32.totalorder %s18, 0
      %p53 = por %p51, %p52
      %p54 = scmp.ne.s32.totalorder %s40, %s41
      %p55 = scmp.eq.s32.totalorder %s19, 1
      %p56 = por %p54, %p55
      %p58 = scmp.ne.s32.totalorder %s41, %s57
      %p59 = scmp.eq.s32.totalorder %s19, 0
      %p60 = por %p58, %p59
      %s61 = ssub.s32 %s20, %s32
      %s62 = ssub.s32 %s21, %s28
      %s63 = sor.u32 %s61, %s62
      %p64 = scmp.eq.s32.totalorder %s63, 0
      %s66 = sadd.s32 %s65, 1
      %s67 = scalar_select %p64, %s65, %s66
      %p70 = pneg %p64
      %p71 = scmp.eq.s32.totalorder %s13, 1
      %p72 = por %p70, %p71
      %p73 = scmp.ne.s32.totalorder %s65, %s68
      %p74 = scmp.eq.s32.totalorder %s13, 0
      %p75 = por %p73, %p74
      %p76 = scmp.ne.s32.totalorder %s65, %s68
      %p77 = scmp.eq.s32.totalorder %s18, 1
      %p78 = por %p76, %p77
      %p79 = scmp.ne.s32.totalorder %s68, %s69
      %p80 = scmp.eq.s32.totalorder %s18, 0
      %p81 = por %p79, %p80
      %p82 = scmp.ne.s32.totalorder %s68, %s69
      %p83 = scmp.eq.s32.totalorder %s19, 1
      %p84 = por %p82, %p83
      %p86 = scmp.ne.s32.totalorder %s69, %s85
      %p87 = scmp.eq.s32.totalorder %s19, 0
      %p88 = por %p86, %p87
      %p89 = scmp.le.s32.totalorder 1, %s13
      %p90 = scmp.lt.s32.totalorder %s13, 3
      %p91 = pnand %p89, %p90
      %p92 = pneg %p91
      // Predicated region
      $region9: #{tpu_custom_call.1} parent=5 // pred_check
        _
      $region10: #{tpu_custom_call.1} parent=5 // pred_check_branch
        %94 = sbr.rel (%p91) target = $region12
      $region11: #{tpu_custom_call.1} parent=5 // pred_region
        %s95 = ssub.s32 %s13, 1
      $region12: #{tpu_custom_call.1} parent=5 // pred_fallthru
        _
      %p96 = scmp.lt.s32.totalorder %s13, 2
      // Predicated region
      $region13: #{tpu_custom_call.1} parent=5 // pred_check
        %p97 = pneg %p96
      $region14: #{tpu_custom_call.1} parent=5 // pred_check_branch
        %99 = sbr.rel (%p97) target = $region16
      $region15: #{tpu_custom_call.1} parent=5 // pred_region
        // Predicated region
        $region17: #{tpu_custom_call.1} parent=15 // pred_check
          %p100 = pneg %p47
        $region18: #{tpu_custom_call.1} parent=15 // pred_check_branch
          %102 = sbr.rel (%p100) target = $region20
        $region19: #{tpu_custom_call.1} parent=15 // pred_region
          %s103 = sand.u32 %s37, 1
          %s104 = scalar_lea.sflag [#allocation3], %s103
          %s105 = sand.u32 %s37, 1
          %s106 = smul.addr %s105, 8
          %s107 = scalar_lea.vmem [#allocation2], %s106
          %s109 = ssub.s32 128, 128
          %110 = vsyncadd %s104, %s109
          %s111 = sadd.s32 %s21, %s20
          %s112 = smul.addr %s111, 128
          %s113 = scalar_lea.hbm %s0, %s112
          %s115 = sshll.u32 %s107, 4
          %s116 = int_to_ptr.vmem [resolvable:$true] %s115
          %118 = dma.hbm_to_vmem [thread:$0]  %s113, 128, %s116, %s104
        $region20: #{tpu_custom_call.1} parent=15 // pred_fallthru
          _
      $region16: #{tpu_custom_call.1} parent=5 // pred_fallthru
        _
      %p119 = scmp.le.s32.totalorder 1, %s13
      %p120 = scmp.lt.s32.totalorder %s13, 3
      %p121 = pnand %p119, %p120
      %p122 = pneg %p121
      // Predicated region
      $region21: #{tpu_custom_call.1} parent=5 // pred_check
        _
      $region22: #{tpu_custom_call.1} parent=5 // pred_check_branch
        %124 = sbr.rel (%p121) target = $region24
      $region23: #{tpu_custom_call.1} parent=5 // pred_region
        %s125 = ssub.s32 %s13, 1
        %s126 = sand.u32 %s40, 1
        %s127 = scalar_lea.sflag [#allocation3], %s126
        %s128 = sand.u32 %s40, 1
        %s129 = smul.addr %s128, 8
        %s130 = scalar_lea.vmem [#allocation2], %s129
        // Predicated region
        $region25: #{tpu_custom_call.1} parent=23 // pred_check
          %p131 = pneg %p53
        $region26: #{tpu_custom_call.1} parent=23 // pred_check_branch
          %133 = sbr.rel (%p131) target = $region28
        $region27: #{tpu_custom_call.1} parent=23 // pred_region
          %134 = dma.done %s127, 128
        $region28: #{tpu_custom_call.1} parent=23 // pred_fallthru
          _
        %s135 = sand.u32 %s40, 1
        %s136 = scalar_lea.sflag [#allocation3], %s135
        %s137 = sand.u32 %s40, 1
        %s138 = smul.addr %s137, 8
        %s139 = scalar_lea.vmem [#allocation2], %s138
        %p140 = pneg %p53
        %p141 = pneg %p50
        %p142 = pneg %p81
        %p143 = pneg %p78
        %s144 = sand.u32 %s68, 1
        %s145 = scalar_lea.sflag [#allocation4], %s144
        %s146 = sand.u32 %s68, 1
        %s147 = smul.addr %s146, 96
        %s148 = scalar_lea.vmem [#allocation5], %s147
        %v149 = vld [vmem:[%s130] sm:$0xff]
        %150 = vst [vmem:[%s148] sm:$0xff] %v149
        %151 = vst [vmem:[%s148 + $0x8] sm:$0xff] %v149
        %152 = vst [vmem:[%s148 + $0x10] sm:$0xff] %v149
        %153 = vst [vmem:[%s148 + $0x18] sm:$0xff] %v149
        %154 = vst [vmem:[%s148 + $0x20] sm:$0xff] %v149
        %155 = vst [vmem:[%s148 + $0x28] sm:$0xff] %v149
        %156 = vst [vmem:[%s148 + $0x30] sm:$0xff] %v149
        %157 = vst [vmem:[%s148 + $0x38] sm:$0xff] %v149
        %158 = vst [vmem:[%s148 + $0x40] sm:$0xff] %v149
        %159 = vst [vmem:[%s148 + $0x48] sm:$0xff] %v149
        %160 = vst [vmem:[%s148 + $0x50] sm:$0xff] %v149
        %161 = vst [vmem:[%s148 + $0x58] sm:$0xff] %v149
        %s162 = sand.u32 %s68, 1
        %s163 = scalar_lea.sflag [#allocation4], %s162
        %s164 = sand.u32 %s68, 1
        %s165 = smul.addr %s164, 96
        %s166 = scalar_lea.vmem [#allocation5], %s165
        // Predicated region
        $region29: #{tpu_custom_call.1} parent=23 // pred_check
          %p167 = pneg %p78
        $region30: #{tpu_custom_call.1} parent=23 // pred_check_branch
          %169 = sbr.rel (%p167) target = $region32
        $region31: #{tpu_custom_call.1} parent=23 // pred_region
          %s171 = ssub.s32 1536, 1536
          %172 = vsyncadd %s163, %s171
          %s173 = smul.addr %s22, 12
          %s174 = sadd.s32 %s23, %s173
          %s175 = smul.addr %s174, 128
          %s176 = scalar_lea.hbm %s1, %s175
          %s177 = sshll.u32 %s166, 4
          %s178 = int_to_ptr.vmem [resolvable:$true] %s177
          %183 = dma.vmem_to_hbm [thread:$0]  %s178, 1536, %s176, %s163, 128, 128, 8
        $region32: #{tpu_custom_call.1} parent=23 // pred_fallthru
          _
      $region24: #{tpu_custom_call.1} parent=5 // pred_fallthru
        _
      %p184 = scmp.le.s32.totalorder 2, %s13
      // Predicated region
      $region33: #{tpu_custom_call.1} parent=5 // pred_check
        %p185 = pneg %p184
      $region34: #{tpu_custom_call.1} parent=5 // pred_check_branch
        %187 = sbr.rel (%p185) target = $region36
      $region35: #{tpu_custom_call.1} parent=5 // pred_region
        %s188 = ssub.s32 %s13, 2
        // Predicated region
        $region37: #{tpu_custom_call.1} parent=35 // pred_check
          %p189 = pneg %p84
        $region38: #{tpu_custom_call.1} parent=35 // pred_check_branch
          %191 = sbr.rel (%p189) target = $region40
        $region39: #{tpu_custom_call.1} parent=35 // pred_region
          %s192 = sand.u32 %s69, 1
          %s193 = scalar_lea.sflag [#allocation4], %s192
          %s194 = sand.u32 %s69, 1
          %s195 = smul.addr %s194, 96
          %s196 = scalar_lea.vmem [#allocation5], %s195
          %197 = dma.done %s193, 1536
        $region40: #{tpu_custom_call.1} parent=35 // pred_fallthru
          _
      $region36: #{tpu_custom_call.1} parent=5 // pred_fallthru
        _
    $region6: #{tpu_custom_call.1} parent=1 // loop_footer
      %s17 = sadd.s32 1, %s13
    $region7: #{tpu_custom_call.1} parent=1 // loop_footer_branch
      %12 = sbr.rel target = $region3
    $region8: #{tpu_custom_call.1} parent=1 // loop_exit
      _
    %198 = vsyncpa [#allocation3], 1
    %s199 = scalar_lea.sflag [#allocation3], 1
    %200 = vsyncpa %s199, 1
    %201 = vsyncpa [#allocation4], 1
    %s202 = scalar_lea.sflag [#allocation4], 1
    %203 = vsyncpa %s202, 1

</llo_original>
